<compile_context>
chip_gen: v7x
topology: tpu7x:2x2x1
jax: 0.10.0
libtpu: 0.0.40
codegen_flags: <defaults>
</compile_context>

<pallas_src>
import functools

import jax
import jax.numpy as jnp
from jax.experimental import pallas as pl
from jax.experimental.pallas import tpu as pltpu

NEG_SLOPE = 0.01  # F.leaky_relu default negative_slope
LANES = 128       # TPU lane width; everything feature-wise is padded to this


def _round_up(x, m):
    return (x + m - 1) // m * m


def _leaky_relu(x):
    return jnp.where(x > 0, x, NEG_SLOPE * x)


def betsize_actor_kernel(
    hand_ref, act_ref, mask_ref, bmask_ref,
    emb_ref,
    w1_ref, b1_ref, w2_ref, b2_ref, w3_ref, b3_ref,
    bw1_ref, bb1_ref, bw2_ref, bb2_ref, bw3_ref, bb3_ref,
    aprobs_ref, alogp_ref, bprobs_ref, nblogp_ref,
    *, nA,
):
    f32 = jnp.float32
    bf16 = jnp.bfloat16
    tm = mask_ref.shape[0]

    # --- fused embedding lookup: one-hot(hand | action+64) @ combined table ------
    lane = jax.lax.broadcasted_iota(jnp.int32, (tm, LANES), 1)
    onehot = jnp.where(
        jnp.logical_or(lane == hand_ref[...], lane == act_ref[...]), 1.0, 0.0
    ).astype(bf16)
    x = jnp.dot(onehot, emb_ref[...], preferred_element_type=f32)  # (tm, 128)

    # --- trunk MLP: fc1 -> fc2 (bf16 matmuls, f32 epilogue) -----------------------
    h = _leaky_relu(
        jnp.dot(x.astype(bf16), w1_ref[...], preferred_element_type=f32) + b1_ref[...])
    h = _leaky_relu(
        jnp.dot(h.astype(bf16), w2_ref[...], preferred_element_type=f32) + b2_ref[...])
    h16 = h.astype(bf16)

    # --- category head: fc3 -> softmax -> mask renorm (lane-dense, 128 wide) -----
    # TODO(synk): GaussianNoise only perturbs logits in training mode; identity here.
    logits = jnp.dot(h16, w3_ref[...], preferred_element_type=f32) + b3_ref[...]
    mvals = mask_ref[...]                       # padded mask: 0 beyond nC
    legal = mvals > 0.0
    lm = jnp.max(jnp.where(legal, logits, -jnp.inf), axis=-1, keepdims=True)
    ea = mvals * jnp.where(legal, jnp.exp(logits - lm), 0.0)
    sa = jnp.sum(ea, axis=-1, keepdims=True)
    aprobs_ref[...] = ea * pl.reciprocal(sa, approx=True)
    alogp_ref[...] = jnp.where(
        legal, jnp.log(mvals) + logits - lm - jnp.log(sa), -jnp.inf)

    # --- betsize head: bfc1 -> bfc2 -> bfc3 ---------------------------------------
    b = _leaky_relu(
        jnp.dot(h16, bw1_ref[...], preferred_element_type=f32) + bb1_ref[...])
    b = _leaky_relu(
        jnp.dot(b.astype(bf16), bw2_ref[...], preferred_element_type=f32) + bb2_ref[...])
    blogits = jnp.dot(b.astype(bf16), bw3_ref[...], preferred_element_type=f32) + bb3_ref[...]

    # unmasked softmax over the nA real lanes (matches torch betsize_probs)
    valid = lane < nA
    m1 = jnp.max(jnp.where(valid, blogits, -jnp.inf), axis=-1, keepdims=True)
    eb = jnp.where(valid, jnp.exp(blogits - m1), 0.0)
    sb = jnp.sum(eb, axis=-1, keepdims=True)
    bprobs_ref[...] = eb * pl.reciprocal(sb, approx=True)

    # masked log-softmax for sampling (softmax denominator cancels algebraically)
    bm = bmask_ref[...]                         # padded mask: 0 beyond nA
    legal_b = bm > 0.0
    m2 = jnp.max(jnp.where(legal_b, blogits, -jnp.inf), axis=-1, keepdims=True)
    eb2 = bm * jnp.where(legal_b, jnp.exp(blogits - m2), 0.0)
    s2 = jnp.sum(eb2, axis=-1, keepdims=True)
    nblogp_ref[...] = jnp.where(
        legal_b, jnp.log(bm) + blogits - m2 - jnp.log(s2), -jnp.inf)


def prepare_params(params, nC, nA, hidden_dims=(64, 64)):
    """Host-side re-layout: combined embedding table, lane-padded fc3 heads, bf16 weights."""
    f32, bf16 = jnp.float32, jnp.bfloat16
    h2 = hidden_dims[1]
    emb = jnp.zeros((LANES, LANES), f32)
    emb = emb.at[0:5, 0:64].set(params["hand_emb"])
    emb = emb.at[64:64 + 6, 64:128].set(params["action_emb"])
    w3p = jnp.zeros((h2, LANES), f32).at[:, :nC].set(params["w3"])
    b3p = jnp.zeros((1, LANES), f32).at[:, :nC].set(params["b3"])
    bw3p = jnp.zeros((h2, LANES), f32).at[:, :nA].set(params["bw3"])
    bb3p = jnp.zeros((1, LANES), f32).at[:, :nA].set(params["bb3"])
    return {
        "emb": emb.astype(bf16),
        "w1": params["w1"].astype(bf16), "b1": params["b1"].astype(f32),
        "w2": params["w2"].astype(bf16), "b2": params["b2"].astype(f32),
        "w3p": w3p.astype(bf16), "b3p": b3p,
        "bw1": params["bw1"].astype(bf16), "bb1": params["bb1"].astype(f32),
        "bw2": params["bw2"].astype(bf16), "bb2": params["bb2"].astype(f32),
        "bw3p": bw3p.astype(bf16), "bb3p": bb3p,
    }


def betsize_actor_forward(state, mask, betsize_mask, kparams, mapping):
    """Pure-JAX wrapper reproducing BetsizeActor.forward semantics."""
    M = state.shape[0]
    nC = mask.shape[-1]
    nA = betsize_mask.shape[-1]

    hand_idx = state[:, mapping["state"]["rank"]].astype(jnp.int32)
    act_idx = state[:, mapping["state"]["previous_action"]].astype(jnp.int32) + 64

    # torch checks `if betsize_mask.sum(-1) == 0` (only well-defined for M == 1);
    # generalize to a per-row fallback so multi-row batches never hit 0/0.
    row_sum = jnp.sum(betsize_mask, axis=-1, keepdims=True)
    betsize_mask = jnp.where(row_sum == 0, jnp.ones_like(betsize_mask), betsize_mask)

    # batch tiling: >=512-row tiles for big batches, 8-row-aligned otherwise
    tile_m = 512 if M >= 512 else _round_up(M, 8)
    Mp = _round_up(M, tile_m)
    grid = (Mp // tile_m,)

    hand_p = jnp.zeros((Mp, 1), jnp.int32).at[:M, 0].set(hand_idx)
    act_p = jnp.full((Mp, 1), 64, jnp.int32).at[:M, 0].set(act_idx)
    # lane-pad masks to 128; give padded rows one legal lane so they stay finite
    mask_p = (jnp.zeros((Mp, LANES), jnp.float32)
              .at[:, 0].set(1.0)
              .at[:M, :nC].set(mask.astype(jnp.float32)))
    bmask_p = (jnp.zeros((Mp, LANES), jnp.float32)
               .at[:, 0].set(1.0)
               .at[:M, :nA].set(betsize_mask.astype(jnp.float32)))

    weights = (kparams["emb"],
               kparams["w1"], kparams["b1"], kparams["w2"], kparams["b2"],
               kparams["w3p"], kparams["b3p"],
               kparams["bw1"], kparams["bb1"], kparams["bw2"], kparams["bb2"],
               kparams["bw3p"], kparams["bb3p"])

    row_idx_spec = pl.BlockSpec((tile_m, 1), lambda i: (i, 0))
    row_spec = pl.BlockSpec((tile_m, LANES), lambda i: (i, 0))
    in_specs = ([row_idx_spec, row_idx_spec, row_spec, row_spec]
                + [pl.BlockSpec(w.shape, lambda i: (0, 0)) for w in weights])
    out_spec = pl.BlockSpec((tile_m, LANES), lambda i: (i, 0))

    aprobs_p, alogp_p, bprobs_p, nblogp_p = pl.pallas_call(
        functools.partial(betsize_actor_kernel, nA=nA),
        out_shape=tuple(jax.ShapeDtypeStruct((Mp, LANES), jnp.float32) for _ in range(4)),
        grid=grid,
        in_specs=in_specs,
        out_specs=(out_spec, out_spec, out_spec, out_spec),
        compiler_params=pltpu.CompilerParams(dimension_semantics=("parallel",)),
    )(hand_p, act_p, mask_p, bmask_p, *weights)

    # lane-dense slabs -> logical widths
    action_probs = aprobs_p[:M, :nC]
    action_logp = alogp_p[:M, :nC]
    betsize_probs = bprobs_p[:M, :nA]
    nbetsize_logp = nblogp_p[:M, :nA]

    # --- glue: Categorical sampling + log_prob (from in-kernel log-probs) --------
    key = jax.random.PRNGKey(123)
    k_a, k_b = jax.random.split(key)
    action = jax.random.categorical(k_a, action_logp, axis=-1)
    betsize = jax.random.categorical(k_b, nbetsize_logp, axis=-1)
    rows = jnp.arange(M)
    action_prob = action_logp[rows, action]
    betsize_prob = nbetsize_logp[rows, betsize]

    return {
        "action": action,
        "action_prob": action_prob,
        "action_probs": action_probs,
        "action_category": action,
        "betsize": betsize,
        "betsize_prob": betsize_prob,
        "betsize_probs": betsize_probs,
    }


def init_params(key, nC, nA, hidden_dims=(64, 64)):
    """Deterministic synthetic parameters matching the module's shapes.

    nn.Linear(in, out): weight stored here as (in, out), uniform(-1/sqrt(in), 1/sqrt(in)).
    Embedder(n, 64): normal-init embedding table (n, 64).
    """
    ks = jax.random.split(key, 16)

    def linear(kw, kb, fan_in, fan_out):
        bound = 1.0 / jnp.sqrt(fan_in)
        w = jax.random.uniform(kw, (fan_in, fan_out), jnp.float32, -bound, bound)
        b = jax.random.uniform(kb, (1, fan_out), jnp.float32, -bound, bound)
        return w, b

    params = {}
    params["hand_emb"] = jax.random.normal(ks[0], (5, 64), jnp.float32)
    params["action_emb"] = jax.random.normal(ks[1], (6, 64), jnp.float32)
    params["betsize_emb"] = jax.random.normal(ks[2], (nA, 64), jnp.float32)  # unused in forward
    params["w1"], params["b1"] = linear(ks[3], ks[4], 128, hidden_dims[0])
    params["w2"], params["b2"] = linear(ks[5], ks[6], hidden_dims[0], hidden_dims[1])
    params["w3"], params["b3"] = linear(ks[7], ks[8], hidden_dims[1], nC)
    params["bw1"], params["bb1"] = linear(ks[9], ks[10], 64, hidden_dims[0])
    params["bw2"], params["bb2"] = linear(ks[11], ks[12], hidden_dims[0], hidden_dims[1])
    params["bw3"], params["bb3"] = linear(ks[13], ks[14], hidden_dims[1], nA)
    return params


if __name__ == "__main__":
    # Small shapes consistent with the module: Kuhn-style poker state.
    M = 8          # batch
    nS = 4         # state features (only rank / previous_action columns are used)
    nC = 5         # action categories: check, fold, call, bet, raise
    nA = 4         # betsizes
    mapping = {"state": {"rank": 0, "previous_action": 1}}

    key = jax.random.PRNGKey(0)
    k_params, k_rank, k_act, k_rest, k_mask, k_bmask = jax.random.split(key, 6)
    params = init_params(k_params, nC, nA)
    kparams = prepare_params(params, nC, nA)

    rank = jax.random.randint(k_rank, (M, 1), 0, 5).astype(jnp.float32)
    prev_action = jax.random.randint(k_act, (M, 1), 0, 6).astype(jnp.float32)
    rest = jax.random.normal(k_rest, (M, nS - 2), jnp.float32)
    state = jnp.concatenate([rank, prev_action, rest], axis=-1)  # (M, nS)

    # masks: guarantee at least one legal category per row
    mask = jax.random.bernoulli(k_mask, 0.7, (M, nC)).astype(jnp.float32)
    mask = mask.at[:, 0].set(1.0)
    betsize_mask = jax.random.bernoulli(k_bmask, 0.6, (M, nA)).astype(jnp.float32)
    betsize_mask = betsize_mask.at[:, 0].set(1.0)

    fwd = jax.jit(functools.partial(betsize_actor_forward, kparams=kparams, mapping=mapping))
    outputs = fwd(state, mask, betsize_mask)
    jax.block_until_ready(outputs)

    assert outputs["action_probs"].shape == (M, nC)
    assert outputs["betsize_probs"].shape == (M, nA)
    assert outputs["action"].shape == (M,)
    assert outputs["betsize"].shape == (M,)
    assert bool(jnp.all(jnp.isfinite(outputs["action_probs"])))
    assert bool(jnp.all(jnp.isfinite(outputs["betsize_probs"])))
    print("KERNEL_OK")
</pallas_src>

<mosaic_0001>
module attributes {stable_mosaic.version = 11 : i64} {
  func.func @betsize_actor_kernel(%arg0: i32, %arg1: memref<8x1xi32, #tpu.memory_space<vmem>>, %arg2: memref<8x1xi32, #tpu.memory_space<vmem>>, %arg3: memref<8x128xf32, #tpu.memory_space<vmem>>, %arg4: memref<8x128xf32, #tpu.memory_space<vmem>>, %arg5: memref<128x128xbf16, #tpu.memory_space<vmem>>, %arg6: memref<128x64xbf16, #tpu.memory_space<vmem>>, %arg7: memref<1x64xf32, #tpu.memory_space<vmem>>, %arg8: memref<64x64xbf16, #tpu.memory_space<vmem>>, %arg9: memref<1x64xf32, #tpu.memory_space<vmem>>, %arg10: memref<64x128xbf16, #tpu.memory_space<vmem>>, %arg11: memref<1x128xf32, #tpu.memory_space<vmem>>, %arg12: memref<64x64xbf16, #tpu.memory_space<vmem>>, %arg13: memref<1x64xf32, #tpu.memory_space<vmem>>, %arg14: memref<64x64xbf16, #tpu.memory_space<vmem>>, %arg15: memref<1x64xf32, #tpu.memory_space<vmem>>, %arg16: memref<64x128xbf16, #tpu.memory_space<vmem>>, %arg17: memref<1x128xf32, #tpu.memory_space<vmem>>, %arg18: memref<8x128xf32, #tpu.memory_space<vmem>>, %arg19: memref<8x128xf32, #tpu.memory_space<vmem>>, %arg20: memref<8x128xf32, #tpu.memory_space<vmem>>, %arg21: memref<8x128xf32, #tpu.memory_space<vmem>>) attributes {dimension_semantics = [#tpu.dimension_semantics<parallel>], iteration_bounds = array<i64: 1>, scalar_prefetch = 0 : i64, scratch_operands = 0 : i64, tpu.core_type = #tpu.core_type<tc>, window_params = [{transform_indices = @transform_0, window_bounds = array<i64: 8, 1>}, {transform_indices = @transform_1, window_bounds = array<i64: 8, 1>}, {transform_indices = @transform_2, window_bounds = array<i64: 8, 128>}, {transform_indices = @transform_3, window_bounds = array<i64: 8, 128>}, {pipeline_mode = #tpu.pipeline_mode<synchronous>, transform_indices = @transform_4, window_bounds = array<i64: 128, 128>}, {pipeline_mode = #tpu.pipeline_mode<synchronous>, transform_indices = @transform_5, window_bounds = array<i64: 128, 64>}, {pipeline_mode = #tpu.pipeline_mode<synchronous>, transform_indices = @transform_6, window_bounds = array<i64: 1, 64>}, {pipeline_mode = #tpu.pipeline_mode<synchronous>, transform_indices = @transform_7, window_bounds = array<i64: 64, 64>}, {pipeline_mode = #tpu.pipeline_mode<synchronous>, transform_indices = @transform_8, window_bounds = array<i64: 1, 64>}, {pipeline_mode = #tpu.pipeline_mode<synchronous>, transform_indices = @transform_9, window_bounds = array<i64: 64, 128>}, {pipeline_mode = #tpu.pipeline_mode<synchronous>, transform_indices = @transform_10, window_bounds = array<i64: 1, 128>}, {pipeline_mode = #tpu.pipeline_mode<synchronous>, transform_indices = @transform_11, window_bounds = array<i64: 64, 64>}, {pipeline_mode = #tpu.pipeline_mode<synchronous>, transform_indices = @transform_12, window_bounds = array<i64: 1, 64>}, {pipeline_mode = #tpu.pipeline_mode<synchronous>, transform_indices = @transform_13, window_bounds = array<i64: 64, 64>}, {pipeline_mode = #tpu.pipeline_mode<synchronous>, transform_indices = @transform_14, window_bounds = array<i64: 1, 64>}, {pipeline_mode = #tpu.pipeline_mode<synchronous>, transform_indices = @transform_15, window_bounds = array<i64: 64, 128>}, {pipeline_mode = #tpu.pipeline_mode<synchronous>, transform_indices = @transform_16, window_bounds = array<i64: 1, 128>}, {transform_indices = @transform_17, window_bounds = array<i64: 8, 128>}, {transform_indices = @transform_18, window_bounds = array<i64: 8, 128>}, {transform_indices = @transform_19, window_bounds = array<i64: 8, 128>}, {transform_indices = @transform_20, window_bounds = array<i64: 8, 128>}]} {
    %0 = tpu.iota {dimensions = array<i32: 1>} : vector<8x128xi32>
    %c0 = arith.constant 0 : index
    %c0_0 = arith.constant 0 : index
    %1 = vector.load %arg1[%c0, %c0_0] : memref<8x1xi32, #tpu.memory_space<vmem>>, vector<8x1xi32>
    %2 = vector.broadcast %1 : vector<8x1xi32> to vector<8x128xi32>
    %3 = arith.cmpi eq, %0, %2 : vector<8x128xi32>
    %c0_1 = arith.constant 0 : index
    %c0_2 = arith.constant 0 : index
    %4 = vector.load %arg2[%c0_1, %c0_2] : memref<8x1xi32, #tpu.memory_space<vmem>>, vector<8x1xi32>
    %5 = vector.broadcast %4 : vector<8x1xi32> to vector<8x128xi32>
    %6 = arith.cmpi eq, %0, %5 : vector<8x128xi32>
    %7 = arith.ori %3, %6 : vector<8x128xi1>
    %cst = arith.constant 1.000000e+00 : f32
    %cst_3 = arith.constant 0.000000e+00 : f32
    %8 = vector.broadcast %cst : f32 to vector<8x128xf32>
    %9 = vector.broadcast %cst_3 : f32 to vector<8x128xf32>
    %10 = arith.select %7, %8, %9 : vector<8x128xi1>, vector<8x128xf32>
    %11 = arith.truncf %10 : vector<8x128xf32> to vector<8x128xbf16>
    %c0_4 = arith.constant 0 : index
    %c0_5 = arith.constant 0 : index
    %12 = vector.load %arg5[%c0_4, %c0_5] : memref<128x128xbf16, #tpu.memory_space<vmem>>, vector<128x128xbf16>
    %cst_6 = arith.constant dense<0.000000e+00> : vector<8x128xf32>
    %13 = tpu.matmul %11, %12, %cst_6 {dimension_numbers = #tpu.dot_dimension_numbers<[1], [0], [0], [1], [0, 0, 1, 1], [], []>} : vector<8x128xbf16>, vector<128x128xbf16>, vector<8x128xf32> -> vector<8x128xf32>
    %14 = arith.truncf %13 : vector<8x128xf32> to vector<8x128xbf16>
    %c0_7 = arith.constant 0 : index
    %c0_8 = arith.constant 0 : index
    %15 = vector.load %arg6[%c0_7, %c0_8] : memref<128x64xbf16, #tpu.memory_space<vmem>>, vector<128x64xbf16>
    %cst_9 = arith.constant dense<0.000000e+00> : vector<8x64xf32>
    %16 = tpu.matmul %14, %15, %cst_9 {dimension_numbers = #tpu.dot_dimension_numbers<[1], [0], [0], [1], [0, 0, 1, 1], [], []>} : vector<8x128xbf16>, vector<128x64xbf16>, vector<8x64xf32> -> vector<8x64xf32>
    %c0_10 = arith.constant 0 : index
    %c0_11 = arith.constant 0 : index
    %17 = vector.load %arg7[%c0_10, %c0_11] : memref<1x64xf32, #tpu.memory_space<vmem>>, vector<1x64xf32>
    %18 = vector.broadcast %17 : vector<1x64xf32> to vector<8x64xf32>
    %19 = arith.addf %16, %18 : vector<8x64xf32>
    %cst_12 = arith.constant 0.000000e+00 : f32
    %20 = vector.broadcast %cst_12 : f32 to vector<8x64xf32>
    %21 = arith.cmpf ogt, %19, %20 : vector<8x64xf32>
    %cst_13 = arith.constant 0.00999999977 : f32
    %22 = vector.broadcast %cst_13 : f32 to vector<8x64xf32>
    %23 = arith.mulf %22, %19 : vector<8x64xf32>
    %24 = arith.select %21, %19, %23 : vector<8x64xi1>, vector<8x64xf32>
    %25 = arith.truncf %24 : vector<8x64xf32> to vector<8x64xbf16>
    %c0_14 = arith.constant 0 : index
    %c0_15 = arith.constant 0 : index
    %26 = vector.load %arg8[%c0_14, %c0_15] : memref<64x64xbf16, #tpu.memory_space<vmem>>, vector<64x64xbf16>
    %cst_16 = arith.constant dense<0.000000e+00> : vector<8x64xf32>
    %27 = tpu.matmul %25, %26, %cst_16 {dimension_numbers = #tpu.dot_dimension_numbers<[1], [0], [0], [1], [0, 0, 1, 1], [], []>} : vector<8x64xbf16>, vector<64x64xbf16>, vector<8x64xf32> -> vector<8x64xf32>
    %c0_17 = arith.constant 0 : index
    %c0_18 = arith.constant 0 : index
    %28 = vector.load %arg9[%c0_17, %c0_18] : memref<1x64xf32, #tpu.memory_space<vmem>>, vector<1x64xf32>
    %29 = vector.broadcast %28 : vector<1x64xf32> to vector<8x64xf32>
    %30 = arith.addf %27, %29 : vector<8x64xf32>
    %cst_19 = arith.constant 0.000000e+00 : f32
    %31 = vector.broadcast %cst_19 : f32 to vector<8x64xf32>
    %32 = arith.cmpf ogt, %30, %31 : vector<8x64xf32>
    %cst_20 = arith.constant 0.00999999977 : f32
    %33 = vector.broadcast %cst_20 : f32 to vector<8x64xf32>
    %34 = arith.mulf %33, %30 : vector<8x64xf32>
    %35 = arith.select %32, %30, %34 : vector<8x64xi1>, vector<8x64xf32>
    %36 = arith.truncf %35 : vector<8x64xf32> to vector<8x64xbf16>
    %c0_21 = arith.constant 0 : index
    %c0_22 = arith.constant 0 : index
    %37 = vector.load %arg10[%c0_21, %c0_22] : memref<64x128xbf16, #tpu.memory_space<vmem>>, vector<64x128xbf16>
    %cst_23 = arith.constant dense<0.000000e+00> : vector<8x128xf32>
    %38 = tpu.matmul %36, %37, %cst_23 {dimension_numbers = #tpu.dot_dimension_numbers<[1], [0], [0], [1], [0, 0, 1, 1], [], []>} : vector<8x64xbf16>, vector<64x128xbf16>, vector<8x128xf32> -> vector<8x128xf32>
    %c0_24 = arith.constant 0 : index
    %c0_25 = arith.constant 0 : index
    %39 = vector.load %arg11[%c0_24, %c0_25] : memref<1x128xf32, #tpu.memory_space<vmem>>, vector<1x128xf32>
    %40 = vector.broadcast %39 : vector<1x128xf32> to vector<8x128xf32>
    %41 = arith.addf %38, %40 : vector<8x128xf32>
    %c0_26 = arith.constant 0 : index
    %c0_27 = arith.constant 0 : index
    %42 = vector.load %arg3[%c0_26, %c0_27] : memref<8x128xf32, #tpu.memory_space<vmem>>, vector<8x128xf32>
    %cst_28 = arith.constant 0.000000e+00 : f32
    %43 = vector.broadcast %cst_28 : f32 to vector<8x128xf32>
    %44 = arith.cmpf ogt, %42, %43 : vector<8x128xf32>
    %cst_29 = arith.constant 0xFF800000 : f32
    %45 = vector.broadcast %cst_29 : f32 to vector<8x128xf32>
    %46 = arith.select %44, %41, %45 : vector<8x128xi1>, vector<8x128xf32>
    %cst_30 = arith.constant dense<0xFF800000> : vector<8xf32>
    %47 = vector.multi_reduction <maximumf>, %46, %cst_30 [1] : vector<8x128xf32> to vector<8xf32>
    %48 = vector.shape_cast %47 : vector<8xf32> to vector<8x1xf32>
    %49 = vector.broadcast %48 : vector<8x1xf32> to vector<8x128xf32>
    %50 = arith.subf %41, %49 : vector<8x128xf32>
    %51 = math.exp %50 : vector<8x128xf32>
    %cst_31 = arith.constant 0.000000e+00 : f32
    %52 = vector.broadcast %cst_31 : f32 to vector<8x128xf32>
    %53 = arith.select %44, %51, %52 : vector<8x128xi1>, vector<8x128xf32>
    %54 = arith.mulf %42, %53 : vector<8x128xf32>
    %cst_32 = arith.constant dense<0.000000e+00> : vector<8xf32>
    %55 = vector.multi_reduction <add>, %54, %cst_32 [1] : vector<8x128xf32> to vector<8xf32>
    %56 = vector.shape_cast %55 : vector<8xf32> to vector<8x1xf32>
    %57 = tpu.reciprocal %56 {approx = true} : vector<8x1xf32> -> vector<8x1xf32>
    %58 = vector.broadcast %57 : vector<8x1xf32> to vector<8x128xf32>
    %59 = arith.mulf %54, %58 : vector<8x128xf32>
    %c0_33 = arith.constant 0 : index
    %c0_34 = arith.constant 0 : index
    %60 = vector.load %arg18[%c0_33, %c0_34] : memref<8x128xf32, #tpu.memory_space<vmem>>, vector<8x128xf32>
    tpu.vector_store %arg18[%c0_33, %c0_34], %59 {strides = array<i32>} : memref<8x128xf32, #tpu.memory_space<vmem>>, vector<8x128xf32>,
    %61 = math.log %42 : vector<8x128xf32>
    %62 = arith.addf %61, %41 : vector<8x128xf32>
    %63 = vector.broadcast %48 : vector<8x1xf32> to vector<8x128xf32>
    %64 = arith.subf %62, %63 : vector<8x128xf32>
    %65 = math.log %56 : vector<8x1xf32>
    %66 = vector.broadcast %65 : vector<8x1xf32> to vector<8x128xf32>
    %67 = arith.subf %64, %66 : vector<8x128xf32>
    %cst_35 = arith.constant 0xFF800000 : f32
    %68 = vector.broadcast %cst_35 : f32 to vector<8x128xf32>
    %69 = arith.select %44, %67, %68 : vector<8x128xi1>, vector<8x128xf32>
    %c0_36 = arith.constant 0 : index
    %c0_37 = arith.constant 0 : index
    %70 = vector.load %arg19[%c0_36, %c0_37] : memref<8x128xf32, #tpu.memory_space<vmem>>, vector<8x128xf32>
    tpu.vector_store %arg19[%c0_36, %c0_37], %69 {strides = array<i32>} : memref<8x128xf32, #tpu.memory_space<vmem>>, vector<8x128xf32>,
    %c0_38 = arith.constant 0 : index
    %c0_39 = arith.constant 0 : index
    %71 = vector.load %arg12[%c0_38, %c0_39] : memref<64x64xbf16, #tpu.memory_space<vmem>>, vector<64x64xbf16>
    %cst_40 = arith.constant dense<0.000000e+00> : vector<8x64xf32>
    %72 = tpu.matmul %36, %71, %cst_40 {dimension_numbers = #tpu.dot_dimension_numbers<[1], [0], [0], [1], [0, 0, 1, 1], [], []>} : vector<8x64xbf16>, vector<64x64xbf16>, vector<8x64xf32> -> vector<8x64xf32>
    %c0_41 = arith.constant 0 : index
    %c0_42 = arith.constant 0 : index
    %73 = vector.load %arg13[%c0_41, %c0_42] : memref<1x64xf32, #tpu.memory_space<vmem>>, vector<1x64xf32>
    %74 = vector.broadcast %73 : vector<1x64xf32> to vector<8x64xf32>
    %75 = arith.addf %72, %74 : vector<8x64xf32>
    %cst_43 = arith.constant 0.000000e+00 : f32
    %76 = vector.broadcast %cst_43 : f32 to vector<8x64xf32>
    %77 = arith.cmpf ogt, %75, %76 : vector<8x64xf32>
    %cst_44 = arith.constant 0.00999999977 : f32
    %78 = vector.broadcast %cst_44 : f32 to vector<8x64xf32>
    %79 = arith.mulf %78, %75 : vector<8x64xf32>
    %80 = arith.select %77, %75, %79 : vector<8x64xi1>, vector<8x64xf32>
    %81 = arith.truncf %80 : vector<8x64xf32> to vector<8x64xbf16>
    %c0_45 = arith.constant 0 : index
    %c0_46 = arith.constant 0 : index
    %82 = vector.load %arg14[%c0_45, %c0_46] : memref<64x64xbf16, #tpu.memory_space<vmem>>, vector<64x64xbf16>
    %cst_47 = arith.constant dense<0.000000e+00> : vector<8x64xf32>
    %83 = tpu.matmul %81, %82, %cst_47 {dimension_numbers = #tpu.dot_dimension_numbers<[1], [0], [0], [1], [0, 0, 1, 1], [], []>} : vector<8x64xbf16>, vector<64x64xbf16>, vector<8x64xf32> -> vector<8x64xf32>
    %c0_48 = arith.constant 0 : index
    %c0_49 = arith.constant 0 : index
    %84 = vector.load %arg15[%c0_48, %c0_49] : memref<1x64xf32, #tpu.memory_space<vmem>>, vector<1x64xf32>
    %85 = vector.broadcast %84 : vector<1x64xf32> to vector<8x64xf32>
    %86 = arith.addf %83, %85 : vector<8x64xf32>
    %cst_50 = arith.constant 0.000000e+00 : f32
    %87 = vector.broadcast %cst_50 : f32 to vector<8x64xf32>
    %88 = arith.cmpf ogt, %86, %87 : vector<8x64xf32>
    %cst_51 = arith.constant 0.00999999977 : f32
    %89 = vector.broadcast %cst_51 : f32 to vector<8x64xf32>
    %90 = arith.mulf %89, %86 : vector<8x64xf32>
    %91 = arith.select %88, %86, %90 : vector<8x64xi1>, vector<8x64xf32>
    %92 = arith.truncf %91 : vector<8x64xf32> to vector<8x64xbf16>
    %c0_52 = arith.constant 0 : index
    %c0_53 = arith.constant 0 : index
    %93 = vector.load %arg16[%c0_52, %c0_53] : memref<64x128xbf16, #tpu.memory_space<vmem>>, vector<64x128xbf16>
    %cst_54 = arith.constant dense<0.000000e+00> : vector<8x128xf32>
    %94 = tpu.matmul %92, %93, %cst_54 {dimension_numbers = #tpu.dot_dimension_numbers<[1], [0], [0], [1], [0, 0, 1, 1], [], []>} : vector<8x64xbf16>, vector<64x128xbf16>, vector<8x128xf32> -> vector<8x128xf32>
    %c0_55 = arith.constant 0 : index
    %c0_56 = arith.constant 0 : index
    %95 = vector.load %arg17[%c0_55, %c0_56] : memref<1x128xf32, #tpu.memory_space<vmem>>, vector<1x128xf32>
    %96 = vector.broadcast %95 : vector<1x128xf32> to vector<8x128xf32>
    %97 = arith.addf %94, %96 : vector<8x128xf32>
    %c4_i32 = arith.constant 4 : i32
    %98 = vector.broadcast %c4_i32 : i32 to vector<8x128xi32>
    %99 = arith.cmpi slt, %0, %98 : vector<8x128xi32>
    %cst_57 = arith.constant 0xFF800000 : f32
    %100 = vector.broadcast %cst_57 : f32 to vector<8x128xf32>
    %101 = arith.select %99, %97, %100 : vector<8x128xi1>, vector<8x128xf32>
    %cst_58 = arith.constant dense<0xFF800000> : vector<8xf32>
    %102 = vector.multi_reduction <maximumf>, %101, %cst_58 [1] : vector<8x128xf32> to vector<8xf32>
    %103 = vector.shape_cast %102 : vector<8xf32> to vector<8x1xf32>
    %104 = vector.broadcast %103 : vector<8x1xf32> to vector<8x128xf32>
    %105 = arith.subf %97, %104 : vector<8x128xf32>
    %106 = math.exp %105 : vector<8x128xf32>
    %cst_59 = arith.constant 0.000000e+00 : f32
    %107 = vector.broadcast %cst_59 : f32 to vector<8x128xf32>
    %108 = arith.select %99, %106, %107 : vector<8x128xi1>, vector<8x128xf32>
    %cst_60 = arith.constant dense<0.000000e+00> : vector<8xf32>
    %109 = vector.multi_reduction <add>, %108, %cst_60 [1] : vector<8x128xf32> to vector<8xf32>
    %110 = vector.shape_cast %109 : vector<8xf32> to vector<8x1xf32>
    %111 = tpu.reciprocal %110 {approx = true} : vector<8x1xf32> -> vector<8x1xf32>
    %112 = vector.broadcast %111 : vector<8x1xf32> to vector<8x128xf32>
    %113 = arith.mulf %108, %112 : vector<8x128xf32>
    %c0_61 = arith.constant 0 : index
    %c0_62 = arith.constant 0 : index
    %114 = vector.load %arg20[%c0_61, %c0_62] : memref<8x128xf32, #tpu.memory_space<vmem>>, vector<8x128xf32>
    tpu.vector_store %arg20[%c0_61, %c0_62], %113 {strides = array<i32>} : memref<8x128xf32, #tpu.memory_space<vmem>>, vector<8x128xf32>,
    %c0_63 = arith.constant 0 : index
    %c0_64 = arith.constant 0 : index
    %115 = vector.load %arg4[%c0_63, %c0_64] : memref<8x128xf32, #tpu.memory_space<vmem>>, vector<8x128xf32>
    %cst_65 = arith.constant 0.000000e+00 : f32
    %116 = vector.broadcast %cst_65 : f32 to vector<8x128xf32>
    %117 = arith.cmpf ogt, %115, %116 : vector<8x128xf32>
    %cst_66 = arith.constant 0xFF800000 : f32
    %118 = vector.broadcast %cst_66 : f32 to vector<8x128xf32>
    %119 = arith.select %117, %97, %118 : vector<8x128xi1>, vector<8x128xf32>
    %cst_67 = arith.constant dense<0xFF800000> : vector<8xf32>
    %120 = vector.multi_reduction <maximumf>, %119, %cst_67 [1] : vector<8x128xf32> to vector<8xf32>
    %121 = vector.shape_cast %120 : vector<8xf32> to vector<8x1xf32>
    %122 = vector.broadcast %121 : vector<8x1xf32> to vector<8x128xf32>
    %123 = arith.subf %97, %122 : vector<8x128xf32>
    %124 = math.exp %123 : vector<8x128xf32>
    %cst_68 = arith.constant 0.000000e+00 : f32
    %125 = vector.broadcast %cst_68 : f32 to vector<8x128xf32>
    %126 = arith.select %117, %124, %125 : vector<8x128xi1>, vector<8x128xf32>
    %127 = arith.mulf %115, %126 : vector<8x128xf32>
    %cst_69 = arith.constant dense<0.000000e+00> : vector<8xf32>
    %128 = vector.multi_reduction <add>, %127, %cst_69 [1] : vector<8x128xf32> to vector<8xf32>
    %129 = vector.shape_cast %128 : vector<8xf32> to vector<8x1xf32>
    %130 = math.log %115 : vector<8x128xf32>
    %131 = arith.addf %130, %97 : vector<8x128xf32>
    %132 = vector.broadcast %121 : vector<8x1xf32> to vector<8x128xf32>
    %133 = arith.subf %131, %132 : vector<8x128xf32>
    %134 = math.log %129 : vector<8x1xf32>
    %135 = vector.broadcast %134 : vector<8x1xf32> to vector<8x128xf32>
    %136 = arith.subf %133, %135 : vector<8x128xf32>
    %cst_70 = arith.constant 0xFF800000 : f32
    %137 = vector.broadcast %cst_70 : f32 to vector<8x128xf32>
    %138 = arith.select %117, %136, %137 : vector<8x128xi1>, vector<8x128xf32>
    %c0_71 = arith.constant 0 : index
    %c0_72 = arith.constant 0 : index
    %139 = vector.load %arg21[%c0_71, %c0_72] : memref<8x128xf32, #tpu.memory_space<vmem>>, vector<8x128xf32>
    tpu.vector_store %arg21[%c0_71, %c0_72], %138 {strides = array<i32>} : memref<8x128xf32, #tpu.memory_space<vmem>>, vector<8x128xf32>,
    return
  }
  func.func @transform_0(%arg0: i32) -> (i32, i32) {
    %c0_i32 = arith.constant 0 : i32
    %c0_i32_0 = arith.constant 0 : i32
    return %arg0, %c0_i32 : i32, i32
  }
  func.func @transform_1(%arg0: i32) -> (i32, i32) {
    %c0_i32 = arith.constant 0 : i32
    %c0_i32_0 = arith.constant 0 : i32
    return %arg0, %c0_i32 : i32, i32
  }
  func.func @transform_2(%arg0: i32) -> (i32, i32) {
    %c0_i32 = arith.constant 0 : i32
    %c0_i32_0 = arith.constant 0 : i32
    return %arg0, %c0_i32 : i32, i32
  }
  func.func @transform_3(%arg0: i32) -> (i32, i32) {
    %c0_i32 = arith.constant 0 : i32
    %c0_i32_0 = arith.constant 0 : i32
    return %arg0, %c0_i32 : i32, i32
  }
  func.func @transform_4(%arg0: i32) -> (i32, i32) {
    %c0_i32 = arith.constant 0 : i32
    %c0_i32_0 = arith.constant 0 : i32
    %c0_i32_1 = arith.constant 0 : i32
    return %c0_i32, %c0_i32_0 : i32, i32
  }
  func.func @transform_5(%arg0: i32) -> (i32, i32) {
    %c0_i32 = arith.constant 0 : i32
    %c0_i32_0 = arith.constant 0 : i32
    %c0_i32_1 = arith.constant 0 : i32
    return %c0_i32, %c0_i32_0 : i32, i32
  }
  func.func @transform_6(%arg0: i32) -> (i32, i32) {
    %c0_i32 = arith.constant 0 : i32
    %c0_i32_0 = arith.constant 0 : i32
    %c0_i32_1 = arith.constant 0 : i32
    return %c0_i32, %c0_i32_0 : i32, i32
  }
  func.func @transform_7(%arg0: i32) -> (i32, i32) {
    %c0_i32 = arith.constant 0 : i32
    %c0_i32_0 = arith.constant 0 : i32
    %c0_i32_1 = arith.constant 0 : i32
    return %c0_i32, %c0_i32_0 : i32, i32
  }
  func.func @transform_8(%arg0: i32) -> (i32, i32) {
    %c0_i32 = arith.constant 0 : i32
    %c0_i32_0 = arith.constant 0 : i32
    %c0_i32_1 = arith.constant 0 : i32
    return %c0_i32, %c0_i32_0 : i32, i32
  }
  func.func @transform_9(%arg0: i32) -> (i32, i32) {
    %c0_i32 = arith.constant 0 : i32
    %c0_i32_0 = arith.constant 0 : i32
    %c0_i32_1 = arith.constant 0 : i32
    return %c0_i32, %c0_i32_0 : i32, i32
  }
  func.func @transform_10(%arg0: i32) -> (i32, i32) {
    %c0_i32 = arith.constant 0 : i32
    %c0_i32_0 = arith.constant 0 : i32
    %c0_i32_1 = arith.constant 0 : i32
    return %c0_i32, %c0_i32_0 : i32, i32
  }
  func.func @transform_11(%arg0: i32) -> (i32, i32) {
    %c0_i32 = arith.constant 0 : i32
    %c0_i32_0 = arith.constant 0 : i32
    %c0_i32_1 = arith.constant 0 : i32
    return %c0_i32, %c0_i32_0 : i32, i32
  }
  func.func @transform_12(%arg0: i32) -> (i32, i32) {
    %c0_i32 = arith.constant 0 : i32
    %c0_i32_0 = arith.constant 0 : i32
    %c0_i32_1 = arith.constant 0 : i32
    return %c0_i32, %c0_i32_0 : i32, i32
  }
  func.func @transform_13(%arg0: i32) -> (i32, i32) {
    %c0_i32 = arith.constant 0 : i32
    %c0_i32_0 = arith.constant 0 : i32
    %c0_i32_1 = arith.constant 0 : i32
    return %c0_i32, %c0_i32_0 : i32, i32
  }
  func.func @transform_14(%arg0: i32) -> (i32, i32) {
    %c0_i32 = arith.constant 0 : i32
    %c0_i32_0 = arith.constant 0 : i32
    %c0_i32_1 = arith.constant 0 : i32
    return %c0_i32, %c0_i32_0 : i32, i32
  }
  func.func @transform_15(%arg0: i32) -> (i32, i32) {
    %c0_i32 = arith.constant 0 : i32
    %c0_i32_0 = arith.constant 0 : i32
    %c0_i32_1 = arith.constant 0 : i32
    return %c0_i32, %c0_i32_0 : i32, i32
  }
  func.func @transform_16(%arg0: i32) -> (i32, i32) {
    %c0_i32 = arith.constant 0 : i32
    %c0_i32_0 = arith.constant 0 : i32
    %c0_i32_1 = arith.constant 0 : i32
    return %c0_i32, %c0_i32_0 : i32, i32
  }
  func.func @transform_17(%arg0: i32) -> (i32, i32) {
    %c0_i32 = arith.constant 0 : i32
    %c0_i32_0 = arith.constant 0 : i32
    return %arg0, %c0_i32 : i32, i32
  }
  func.func @transform_18(%arg0: i32) -> (i32, i32) {
    %c0_i32 = arith.constant 0 : i32
    %c0_i32_0 = arith.constant 0 : i32
    return %arg0, %c0_i32 : i32, i32
  }
  func.func @transform_19(%arg0: i32) -> (i32, i32) {
    %c0_i32 = arith.constant 0 : i32
    %c0_i32_0 = arith.constant 0 : i32
    return %arg0, %c0_i32 : i32, i32
  }
  func.func @transform_20(%arg0: i32) -> (i32, i32) {
    %c0_i32 = arith.constant 0 : i32
    %c0_i32_0 = arith.constant 0 : i32
    return %arg0, %c0_i32 : i32, i32
  }
}

</mosaic_0001>

<llo_original>
// kernel: betsize_actor_forward.1
$region0: #{betsize_actor_forward.1}
  #allocation0 [shape = 'u32[]', space=smem, size = 0x4, offset = 0x4, fixed_abs, tag = 'smem constant byte address 0x4 - core index']
  #allocation1 [shape = 'u32[144,128]{1,0:T(1,128)}', space=vmem, size = 0x12000, scoped, tag = 'internal scratch']
  %s0 = inlined_call_operand.vmem [shape: s32[8,1], index: 0, kind: input, shape index: {}]
  %s1 = inlined_call_operand.vmem [shape: s32[8,1], index: 1, kind: input, shape index: {}]
  %s2 = inlined_call_operand.vmem [shape: f32[8,128], index: 2, kind: input, shape index: {}]
  %s3 = inlined_call_operand.vmem [shape: f32[8,128], index: 3, kind: input, shape index: {}]
  %s4 = inlined_call_operand.vmem [shape: bf16[128,128], index: 4, kind: input, shape index: {}]
  %s5 = inlined_call_operand.vmem [shape: bf16[128,64], index: 5, kind: input, shape index: {}]
  %s6 = inlined_call_operand.vmem [shape: f32[1,64], index: 6, kind: input, shape index: {}]
  %s7 = inlined_call_operand.vmem [shape: bf16[64,64], index: 7, kind: input, shape index: {}]
  %s8 = inlined_call_operand.vmem [shape: f32[1,64], index: 8, kind: input, shape index: {}]
  %s9 = inlined_call_operand.vmem [shape: bf16[64,128], index: 9, kind: input, shape index: {}]
  %s10 = inlined_call_operand.hbm [shape: f32[1,128], index: 10, kind: input, shape index: {}]
  %s11 = inlined_call_operand.vmem [shape: bf16[64,64], index: 11, kind: input, shape index: {}]
  %s12 = inlined_call_operand.hbm [shape: f32[1,64], index: 12, kind: input, shape index: {}]
  %s13 = inlined_call_operand.vmem [shape: bf16[64,64], index: 13, kind: input, shape index: {}]
  %s14 = inlined_call_operand.hbm [shape: f32[1,64], index: 14, kind: input, shape index: {}]
  %s15 = inlined_call_operand.hbm [shape: bf16[64,128], index: 15, kind: input, shape index: {}]
  %s16 = inlined_call_operand.hbm [shape: f32[1,128], index: 16, kind: input, shape index: {}]
  %s17 = inlined_call_operand.hbm [shape: f32[8,128], index: 17, kind: output, shape index: {0}]
  %s18 = inlined_call_operand.vmem [shape: f32[8,128], index: 18, kind: output, shape index: {1}]
  %s19 = inlined_call_operand.vmem [shape: f32[8,128], index: 19, kind: output, shape index: {2}]
  %s20 = inlined_call_operand.vmem [shape: f32[8,128], index: 20, kind: output, shape index: {3}]
  %21 = xla_tuple %s17, %s18, %s19, %s20
  %s22 = sld [smem:[#allocation0]]
  $region122: #{betsize_actor_forward.1} parent=0
    _
  %s24 = ssub.s32 1, %s22
  %s25 = scalar_select 0, %s24, %s22
  $region1: #{betsize_actor_forward.1} parent=0
    #allocation2 [shape = 'u8[512]{0}', space=vmem, size = 0x400, scoped, tag = 'input window, operand 10, single buffered']
    #allocation3 [shape = 's32[1]{0}', space=sflag, size = 0x4, scoped, tag = 'scoped memory for betsize_actor_forward.1']
    #allocation4 [shape = 's32[1]{0}', space=sflag, size = 0x4, scoped, tag = 'scoped memory for betsize_actor_forward.1']
    #allocation5 [shape = 'u8[512]{0}', space=vmem, size = 0x400, scoped, tag = 'input window, operand 12, single buffered']
    #allocation6 [shape = 's32[1]{0}', space=sflag, size = 0x4, scoped, tag = 'scoped memory for betsize_actor_forward.1']
    #allocation7 [shape = 'u8[512]{0}', space=vmem, size = 0x400, scoped, tag = 'input window, operand 14, single buffered']
    #allocation8 [shape = 'u8[16384]{0}', space=vmem, size = 0x4000, scoped, tag = 'input window, operand 15, single buffered']
    #allocation9 [shape = 's32[1]{0}', space=sflag, size = 0x4, scoped, tag = 'scoped memory for betsize_actor_forward.1']
    #allocation10 [shape = 'u8[512]{0}', space=vmem, size = 0x400, scoped, tag = 'input window, operand 16, single buffered']
    #allocation11 [shape = 'u8[4096]{0}', space=vmem, size = 0x1000, scoped, tag = 'output window, operand 0, single buffered']
    %26 = vsyncpa [#allocation3], 0
    %27 = vsyncpa [#allocation6], 0
    %28 = vsyncpa [#allocation9], 0
    %29 = vsyncpa [#allocation4], 0
    // Predicated region
    $region2: #{betsize_actor_forward.1} parent=1 // pred_check
      _
    $region3: #{betsize_actor_forward.1} parent=1 // pred_check_branch
      %31 = sbr.rel (0) target = $region5
    $region4: #{betsize_actor_forward.1} parent=1 // pred_region
      _
    $region5: #{betsize_actor_forward.1} parent=1 // pred_fallthru
      _
    // Predicated region
    $region6: #{betsize_actor_forward.1} parent=1 // pred_check
      _
    $region7: #{betsize_actor_forward.1} parent=1 // pred_check_branch
      %33 = sbr.rel (0) target = $region9
    $region8: #{betsize_actor_forward.1} parent=1 // pred_region
      _
    $region9: #{betsize_actor_forward.1} parent=1 // pred_fallthru
      _
    // Predicated region
    $region10: #{betsize_actor_forward.1} parent=1 // pred_check
      _
    $region11: #{betsize_actor_forward.1} parent=1 // pred_check_branch
      %35 = sbr.rel (0) target = $region13
    $region12: #{betsize_actor_forward.1} parent=1 // pred_region
      _
    $region13: #{betsize_actor_forward.1} parent=1 // pred_fallthru
      _
    // Predicated region
    $region14: #{betsize_actor_forward.1} parent=1 // pred_check
      _
    $region15: #{betsize_actor_forward.1} parent=1 // pred_check_branch
      %37 = sbr.rel (0) target = $region17
    $region16: #{betsize_actor_forward.1} parent=1 // pred_region
      _
    $region17: #{betsize_actor_forward.1} parent=1 // pred_fallthru
      _
    // Predicated region
    $region18: #{betsize_actor_forward.1} parent=1 // pred_check
      _
    $region19: #{betsize_actor_forward.1} parent=1 // pred_check_branch
      %39 = sbr.rel (0) target = $region21
    $region20: #{betsize_actor_forward.1} parent=1 // pred_region
      _
    $region21: #{betsize_actor_forward.1} parent=1 // pred_fallthru
      _
    // Predicated region
    $region22: #{betsize_actor_forward.1} parent=1 // pred_check
      _
    $region23: #{betsize_actor_forward.1} parent=1 // pred_check_branch
      %41 = sbr.rel (0) target = $region25
    $region24: #{betsize_actor_forward.1} parent=1 // pred_region
      _
    $region25: #{betsize_actor_forward.1} parent=1 // pred_fallthru
      _
    // Predicated region
    $region26: #{betsize_actor_forward.1} parent=1 // pred_check
      _
    $region27: #{betsize_actor_forward.1} parent=1 // pred_check_branch
      %43 = sbr.rel (0) target = $region29
    $region28: #{betsize_actor_forward.1} parent=1 // pred_region
      _
    $region29: #{betsize_actor_forward.1} parent=1 // pred_fallthru
      _
    // Predicated region
    $region30: #{betsize_actor_forward.1} parent=1 // pred_check
      _
    $region31: #{betsize_actor_forward.1} parent=1 // pred_check_branch
      %45 = sbr.rel (0) target = $region33
    $region32: #{betsize_actor_forward.1} parent=1 // pred_region
      _
    $region33: #{betsize_actor_forward.1} parent=1 // pred_fallthru
      _
    // Predicated region
    $region34: #{betsize_actor_forward.1} parent=1 // pred_check
      _
    $region35: #{betsize_actor_forward.1} parent=1 // pred_check_branch
      %47 = sbr.rel (0) target = $region37
    $region36: #{betsize_actor_forward.1} parent=1 // pred_region
      _
    $region37: #{betsize_actor_forward.1} parent=1 // pred_fallthru
      _
    // Predicated region
    $region38: #{betsize_actor_forward.1} parent=1 // pred_check
      _
    $region39: #{betsize_actor_forward.1} parent=1 // pred_check_branch
      %49 = sbr.rel (0) target = $region41
    $region40: #{betsize_actor_forward.1} parent=1 // pred_region
      _
    $region41: #{betsize_actor_forward.1} parent=1 // pred_fallthru
      _
    // Predicated region
    $region42: #{betsize_actor_forward.1} parent=1 // pred_check
      _
    $region43: #{betsize_actor_forward.1} parent=1 // pred_check_branch
      %51 = sbr.rel (0) target = $region45
    $region44: #{betsize_actor_forward.1} parent=1 // pred_region
      %s53 = ssub.s32 16, 16
      %54 = vsyncadd [#allocation3], %s53
      %s56 = sshll.u32 [#allocation2], 4
      %s57 = int_to_ptr.vmem [resolvable:$true] %s56
      %59 = dma.hbm_to_vmem [thread:$0]  %s10, 16, %s57, [#allocation3]
    $region45: #{betsize_actor_forward.1} parent=1 // pred_fallthru
      _
    // Predicated region
    $region46: #{betsize_actor_forward.1} parent=1 // pred_check
      _
    $region47: #{betsize_actor_forward.1} parent=1 // pred_check_branch
      %61 = sbr.rel (0) target = $region49
    $region48: #{betsize_actor_forward.1} parent=1 // pred_region
      _
    $region49: #{betsize_actor_forward.1} parent=1 // pred_fallthru
      _
    // Predicated region
    $region50: #{betsize_actor_forward.1} parent=1 // pred_check
      _
    $region51: #{betsize_actor_forward.1} parent=1 // pred_check_branch
      %63 = sbr.rel (0) target = $region53
    $region52: #{betsize_actor_forward.1} parent=1 // pred_region
      %s65 = ssub.s32 16, 16
      %66 = vsyncadd [#allocation6], %s65
      %s68 = sshll.u32 [#allocation5], 4
      %s69 = int_to_ptr.vmem [resolvable:$true] %s68
      %71 = dma.hbm_to_vmem [thread:$0]  %s12, 16, %s69, [#allocation6]
    $region53: #{betsize_actor_forward.1} parent=1 // pred_fallthru
      _
    // Predicated region
    $region54: #{betsize_actor_forward.1} parent=1 // pred_check
      _
    $region55: #{betsize_actor_forward.1} parent=1 // pred_check_branch
      %73 = sbr.rel (0) target = $region57
    $region56: #{betsize_actor_forward.1} parent=1 // pred_region
      _
    $region57: #{betsize_actor_forward.1} parent=1 // pred_fallthru
      _
    // Predicated region
    $region58: #{betsize_actor_forward.1} parent=1 // pred_check
      _
    $region59: #{betsize_actor_forward.1} parent=1 // pred_check_branch
      %75 = sbr.rel (0) target = $region61
    $region60: #{betsize_actor_forward.1} parent=1 // pred_region
      %s77 = ssub.s32 16, 16
      %78 = vsyncadd [#allocation6], %s77
      %s80 = sshll.u32 [#allocation7], 4
      %s81 = int_to_ptr.vmem [resolvable:$true] %s80
      %83 = dma.hbm_to_vmem [thread:$0]  %s14, 16, %s81, [#allocation6]
    $region61: #{betsize_actor_forward.1} parent=1 // pred_fallthru
      _
    // Predicated region
    $region62: #{betsize_actor_forward.1} parent=1 // pred_check
      _
    $region63: #{betsize_actor_forward.1} parent=1 // pred_check_branch
      %85 = sbr.rel (0) target = $region65
    $region64: #{betsize_actor_forward.1} parent=1 // pred_region
      %s87 = ssub.s32 512, 512
      %88 = vsyncadd [#allocation9], %s87
      %s89 = sshll.u32 [#allocation8], 4
      %s90 = int_to_ptr.vmem [resolvable:$true] %s89
      %95 = dma.hbm_to_vmem [thread:$0]  %s15, 512, %s90, [#allocation9], 64, 64, 4
    $region65: #{betsize_actor_forward.1} parent=1 // pred_fallthru
      _
    // Predicated region
    $region66: #{betsize_actor_forward.1} parent=1 // pred_check
      _
    $region67: #{betsize_actor_forward.1} parent=1 // pred_check_branch
      %97 = sbr.rel (0) target = $region69
    $region68: #{betsize_actor_forward.1} parent=1 // pred_region
      %s99 = ssub.s32 16, 16
      %100 = vsyncadd [#allocation9], %s99
      %s102 = sshll.u32 [#allocation10], 4
      %s103 = int_to_ptr.vmem [resolvable:$true] %s102
      %105 = dma.hbm_to_vmem [thread:$0]  %s16, 16, %s103, [#allocation9]
    $region69: #{betsize_actor_forward.1} parent=1 // pred_fallthru
      _
    // Predicated region
    $region70: #{betsize_actor_forward.1} parent=1 // pred_check
      _
    $region71: #{betsize_actor_forward.1} parent=1 // pred_check_branch
      %107 = sbr.rel (0) target = $region73
    $region72: #{betsize_actor_forward.1} parent=1 // pred_region
      %108 = dma.done [#allocation3], 16
    $region73: #{betsize_actor_forward.1} parent=1 // pred_fallthru
      _
    // Predicated region
    $region74: #{betsize_actor_forward.1} parent=1 // pred_check
      _
    $region75: #{betsize_actor_forward.1} parent=1 // pred_check_branch
      %110 = sbr.rel (0) target = $region77
    $region76: #{betsize_actor_forward.1} parent=1 // pred_region
      %111 = dma.done [#allocation6], 16
    $region77: #{betsize_actor_forward.1} parent=1 // pred_fallthru
      _
    // Predicated region
    $region78: #{betsize_actor_forward.1} parent=1 // pred_check
      _
    $region79: #{betsize_actor_forward.1} parent=1 // pred_check_branch
      %113 = sbr.rel (0) target = $region81
    $region80: #{betsize_actor_forward.1} parent=1 // pred_region
      %114 = dma.done [#allocation6], 16
    $region81: #{betsize_actor_forward.1} parent=1 // pred_fallthru
      _
    // Predicated region
    $region82: #{betsize_actor_forward.1} parent=1 // pred_check
      _
    $region83: #{betsize_actor_forward.1} parent=1 // pred_check_branch
      %116 = sbr.rel (0) target = $region85
    $region84: #{betsize_actor_forward.1} parent=1 // pred_region
      %117 = dma.done [#allocation9], 512
    $region85: #{betsize_actor_forward.1} parent=1 // pred_fallthru
      _
    // Predicated region
    $region86: #{betsize_actor_forward.1} parent=1 // pred_check
      _
    $region87: #{betsize_actor_forward.1} parent=1 // pred_check_branch
      %119 = sbr.rel (0) target = $region89
    $region88: #{betsize_actor_forward.1} parent=1 // pred_region
      %120 = dma.done [#allocation9], 16
    $region89: #{betsize_actor_forward.1} parent=1 // pred_fallthru
      _
    %v122 = vlaneseq
    %v123 = vand.u32 %v122, 127
    %v124 = vld [vmem:[%s0] sm:$0xff]
    %125 = vset.pattern.permute.xlu0 0
    %126 = vperm.xlu0 %125, %v124
    %v127 = vpop.permute.xlu0 %126
    %vm128 = vcmp.eq.s32.totalorder %v123, %v127
    %v129 = vld [vmem:[%s1] sm:$0xff]
    %130 = vset.pattern.permute.xlu0 0
    %131 = vperm.xlu0 %130, %v129
    %v132 = vpop.permute.xlu0 %131
    %vm133 = vcmp.eq.s32.totalorder %v123, %v132
    %vm134 = vmor %vm128, %vm133
    %v135 = vsel %vm134, 1.0, 0.0
    %v136 = vpack.c.bf16 %v135, %v135
    %v137 = vld [vmem:[%s4] sm:$0xf]
    %v138 = vld [vmem:[%s4 + $0x4] sm:$0xf]
    %v139 = vld [vmem:[%s4 + $0x8] sm:$0xf]
    %v140 = vld [vmem:[%s4 + $0xc] sm:$0xf]
    %v141 = vld [vmem:[%s4 + $0x10] sm:$0xf]
    %v142 = vld [vmem:[%s4 + $0x14] sm:$0xf]
    %v143 = vld [vmem:[%s4 + $0x18] sm:$0xf]
    %v144 = vld [vmem:[%s4 + $0x1c] sm:$0xf]
    %v145 = vld [vmem:[%s4 + $0x20] sm:$0xf]
    %v146 = vld [vmem:[%s4 + $0x24] sm:$0xf]
    %v147 = vld [vmem:[%s4 + $0x28] sm:$0xf]
    %v148 = vld [vmem:[%s4 + $0x2c] sm:$0xf]
    %v149 = vld [vmem:[%s4 + $0x30] sm:$0xf]
    %v150 = vld [vmem:[%s4 + $0x34] sm:$0xf]
    %v151 = vld [vmem:[%s4 + $0x38] sm:$0xf]
    %v152 = vld [vmem:[%s4 + $0x3c] sm:$0xf]
    %v169 = vunpack.c.l.b16 %v137
    %v170 = vunpack.c.l.b16 %v138
    %v171 = vunpack.c.l.b16 %v139
    %v172 = vunpack.c.l.b16 %v140
    %v173 = vunpack.c.l.b16 %v141
    %v174 = vunpack.c.l.b16 %v142
    %v175 = vunpack.c.l.b16 %v143
    %v176 = vunpack.c.l.b16 %v144
    %v177 = vunpack.c.l.b16 %v145
    %v178 = vunpack.c.l.b16 %v146
    %v179 = vunpack.c.l.b16 %v147
    %v180 = vunpack.c.l.b16 %v148
    %v181 = vunpack.c.l.b16 %v149
    %v182 = vunpack.c.l.b16 %v150
    %v183 = vunpack.c.l.b16 %v151
    %v184 = vunpack.c.l.b16 %v152
    %v185 = vpack.c.b16 %v170, %v169
    %v186 = vpack.c.b16 %v172, %v171
    %v187 = vpack.c.b16 %v174, %v173
    %v188 = vpack.c.b16 %v176, %v175
    %v189 = vpack.c.b16 %v178, %v177
    %v190 = vpack.c.b16 %v180, %v179
    %v191 = vpack.c.b16 %v182, %v181
    %v192 = vpack.c.b16 %v184, %v183
    %201 = vmatprep.subr.bf16.mxu0 0
    %202 = vmatpush1.bf16.msra.mxu0 %v185
    %203 = vmatprep.subr.bf16.mxu0 0
    %204 = vmatpush1.bf16.msra.mxu0 %v186
    %205 = vmatprep.subr.bf16.mxu0 0
    %206 = vmatpush1.bf16.msra.mxu0 %v187
    %207 = vmatprep.subr.bf16.mxu0 0
    %208 = vmatpush1.bf16.msra.mxu0 %v188
    %209 = vmatprep.subr.bf16.mxu0 0
    %210 = vmatpush1.bf16.msra.mxu0 %v189
    %211 = vmatprep.subr.bf16.mxu0 0
    %212 = vmatpush1.bf16.msra.mxu0 %v190
    %213 = vmatprep.subr.bf16.mxu0 0
    %214 = vmatpush1.bf16.msra.mxu0 %v191
    %215 = vmatprep.subr.bf16.mxu0 0
    %216 = vmatpush1.bf16.msra.mxu0 %v192
    %217 = vmatprep.subr.bf16.mxu0 0
    %218 = vmatpush1.bf16.msra.mxu0 0
    %219 = vmatprep.subr.bf16.mxu0 0
    %220 = vmatpush1.bf16.msra.mxu0 0
    %221 = vmatprep.subr.bf16.mxu0 0
    %222 = vmatpush1.bf16.msra.mxu0 0
    %223 = vmatprep.subr.bf16.mxu0 0
    %224 = vmatpush1.bf16.msra.mxu0 0
    %225 = vmatprep.subr.bf16.mxu0 0
    %226 = vmatpush1.bf16.msra.mxu0 0
    %227 = vmatprep.subr.bf16.mxu0 0
    %228 = vmatpush1.bf16.msra.mxu0 0
    %229 = vmatprep.subr.bf16.mxu0 0
    %230 = vmatpush1.bf16.msra.mxu0 0
    %231 = vmatprep.subr.bf16.mxu0 0
    %232 = vmatpush1.bf16.msra.mxu0 0
    %233 = vmatprep.mubr.bf16.mxu0 0
    %234 = vmatmul.mubr.bf16.gmra.mrb[0].mxu0 %v136
    %v235 = vpop.f32.mrb[0].mxu0
    %v236 = vadd.f32 0.0, %v235
    %v237 = vpop.f32.mrb[0].mxu0
    %v238 = vpop.f32.mrb[0].mxu0
    %v239 = vpop.f32.mrb[0].mxu0
    %240 = vdwg.mxu0
    %v241 = vpack.c.bf16 %v236, %v236
    %v242 = vld [vmem:[%s5] sm:$0xf]
    %v243 = vld [vmem:[%s5 + $0x4] sm:$0xf]
    %v244 = vld [vmem:[%s5 + $0x8] sm:$0xf]
    %v245 = vld [vmem:[%s5 + $0xc] sm:$0xf]
    %v246 = vld [vmem:[%s5 + $0x10] sm:$0xf]
    %v247 = vld [vmem:[%s5 + $0x14] sm:$0xf]
    %v248 = vld [vmem:[%s5 + $0x18] sm:$0xf]
    %v249 = vld [vmem:[%s5 + $0x1c] sm:$0xf]
    %v250 = vld [vmem:[%s5 + $0x20] sm:$0xf]
    %v251 = vld [vmem:[%s5 + $0x24] sm:$0xf]
    %v252 = vld [vmem:[%s5 + $0x28] sm:$0xf]
    %v253 = vld [vmem:[%s5 + $0x2c] sm:$0xf]
    %v254 = vld [vmem:[%s5 + $0x30] sm:$0xf]
    %v255 = vld [vmem:[%s5 + $0x34] sm:$0xf]
    %v256 = vld [vmem:[%s5 + $0x38] sm:$0xf]
    %v257 = vld [vmem:[%s5 + $0x3c] sm:$0xf]
    %v258 = vld [vmem:[%s6] sm:$0x1]
    %v260 = vlaneseq
    %v261 = vshrl.u32 %v260, 7
    %v262 = vsub.s32 0, %v261
    %v263 = vrot.slane %v258, %v262
    %v281 = vunpack.c.l.b16 %v242
    %v282 = vunpack.c.l.b16 %v243
    %v283 = vunpack.c.l.b16 %v244
    %v284 = vunpack.c.l.b16 %v245
    %v285 = vunpack.c.l.b16 %v246
    %v286 = vunpack.c.l.b16 %v247
    %v287 = vunpack.c.l.b16 %v248
    %v288 = vunpack.c.l.b16 %v249
    %v289 = vunpack.c.l.b16 %v250
    %v290 = vunpack.c.l.b16 %v251
    %v291 = vunpack.c.l.b16 %v252
    %v292 = vunpack.c.l.b16 %v253
    %v293 = vunpack.c.l.b16 %v254
    %v294 = vunpack.c.l.b16 %v255
    %v295 = vunpack.c.l.b16 %v256
    %v296 = vunpack.c.l.b16 %v257
    %v297 = vpack.c.b16 %v282, %v281
    %v298 = vpack.c.b16 %v284, %v283
    %v299 = vpack.c.b16 %v286, %v285
    %v300 = vpack.c.b16 %v288, %v287
    %v301 = vpack.c.b16 %v290, %v289
    %v302 = vpack.c.b16 %v292, %v291
    %v303 = vpack.c.b16 %v294, %v293
    %v304 = vpack.c.b16 %v296, %v295
    %313 = vmatprep.subr.bf16.mxu0 0
    %314 = vmatpush1.bf16.msra.mxu0 %v297
    %315 = vmatprep.subr.bf16.mxu0 0
    %316 = vmatpush1.bf16.msra.mxu0 %v298
    %317 = vmatprep.subr.bf16.mxu0 0
    %318 = vmatpush1.bf16.msra.mxu0 %v299
    %319 = vmatprep.subr.bf16.mxu0 0
    %320 = vmatpush1.bf16.msra.mxu0 %v300
    %321 = vmatprep.subr.bf16.mxu0 0
    %322 = vmatpush1.bf16.msra.mxu0 %v301
    %323 = vmatprep.subr.bf16.mxu0 0
    %324 = vmatpush1.bf16.msra.mxu0 %v302
    %325 = vmatprep.subr.bf16.mxu0 0
    %326 = vmatpush1.bf16.msra.mxu0 %v303
    %327 = vmatprep.subr.bf16.mxu0 0
    %328 = vmatpush1.bf16.msra.mxu0 %v304
    %329 = vmatprep.subr.bf16.mxu0 0
    %330 = vmatpush1.bf16.msra.mxu0 0
    %331 = vmatprep.subr.bf16.mxu0 0
    %332 = vmatpush1.bf16.msra.mxu0 0
    %333 = vmatprep.subr.bf16.mxu0 0
    %334 = vmatpush1.bf16.msra.mxu0 0
    %335 = vmatprep.subr.bf16.mxu0 0
    %336 = vmatpush1.bf16.msra.mxu0 0
    %337 = vmatprep.subr.bf16.mxu0 0
    %338 = vmatpush1.bf16.msra.mxu0 0
    %339 = vmatprep.subr.bf16.mxu0 0
    %340 = vmatpush1.bf16.msra.mxu0 0
    %341 = vmatprep.subr.bf16.mxu0 0
    %342 = vmatpush1.bf16.msra.mxu0 0
    %343 = vmatprep.subr.bf16.mxu0 0
    %344 = vmatpush1.bf16.msra.mxu0 0
    %345 = vmatprep.mubr.bf16.mxu0 0
    %346 = vmatmul.mubr.bf16.gmra.mrb[0].mxu0 %v241
    %v347 = vpop.f32.mrb[0].mxu0
    %v348 = vadd.f32 %v263, %v347
    %v349 = vpop.f32.mrb[0].mxu0
    %v350 = vpop.f32.mrb[0].mxu0
    %v351 = vpop.f32.mrb[0].mxu0
    %352 = vdwg.mxu0
    %vm353 = vcmp.gt.f32.partialorder %v348, 0.0
    %v354 = vmul.f32 %v348, 0.01
    %v355 = vsel %vm353, %v348, %v354
    %v356 = vpack.c.bf16 %v355, %v355
    %v357 = vld [vmem:[%s7] sm:$0xf]
    %v358 = vld [vmem:[%s7 + $0x4] sm:$0xf]
    %v359 = vld [vmem:[%s7 + $0x8] sm:$0xf]
    %v360 = vld [vmem:[%s7 + $0xc] sm:$0xf]
    %v361 = vld [vmem:[%s7 + $0x10] sm:$0xf]
    %v362 = vld [vmem:[%s7 + $0x14] sm:$0xf]
    %v363 = vld [vmem:[%s7 + $0x18] sm:$0xf]
    %v364 = vld [vmem:[%s7 + $0x1c] sm:$0xf]
    %v365 = vld [vmem:[%s8] sm:$0x1]
    %v367 = vlaneseq
    %v368 = vshrl.u32 %v367, 7
    %v369 = vsub.s32 0, %v368
    %v370 = vrot.slane %v365, %v369
    %v380 = vunpack.c.l.b16 %v357
    %v381 = vunpack.c.l.b16 %v358
    %v382 = vunpack.c.l.b16 %v359
    %v383 = vunpack.c.l.b16 %v360
    %v384 = vunpack.c.l.b16 %v361
    %v385 = vunpack.c.l.b16 %v362
    %v386 = vunpack.c.l.b16 %v363
    %v387 = vunpack.c.l.b16 %v364
    %v388 = vpack.c.b16 %v381, %v380
    %v389 = vpack.c.b16 %v383, %v382
    %v390 = vpack.c.b16 %v385, %v384
    %v391 = vpack.c.b16 %v387, %v386
    %vm396 = vcmask 523264
    %v398 = vsel %vm396, %v356, 0
    %400 = vmatprep.subr.bf16.mxu0 0
    %401 = vmatpush1.bf16.msra.mxu0 %v388
    %402 = vmatprep.subr.bf16.mxu0 0
    %403 = vmatpush1.bf16.msra.mxu0 %v389
    %404 = vmatprep.subr.bf16.mxu0 0
    %405 = vmatpush1.bf16.msra.mxu0 %v390
    %406 = vmatprep.subr.bf16.mxu0 0
    %407 = vmatpush1.bf16.msra.mxu0 %v391
    %408 = vmatprep.subr.bf16.mxu0 0
    %409 = vmatpush1.bf16.msra.mxu0 0
    %410 = vmatprep.subr.bf16.mxu0 0
    %411 = vmatpush1.bf16.msra.mxu0 0
    %412 = vmatprep.subr.bf16.mxu0 0
    %413 = vmatpush1.bf16.msra.mxu0 0
    %414 = vmatprep.subr.bf16.mxu0 0
    %415 = vmatpush1.bf16.msra.mxu0 0
    %416 = vmatprep.subr.bf16.mxu0 0
    %417 = vmatpush1.bf16.msra.mxu0 0
    %418 = vmatprep.subr.bf16.mxu0 0
    %419 = vmatpush1.bf16.msra.mxu0 0
    %420 = vmatprep.subr.bf16.mxu0 0
    %421 = vmatpush1.bf16.msra.mxu0 0
    %422 = vmatprep.subr.bf16.mxu0 0
    %423 = vmatpush1.bf16.msra.mxu0 0
    %424 = vmatprep.subr.bf16.mxu0 0
    %425 = vmatpush1.bf16.msra.mxu0 0
    %426 = vmatprep.subr.bf16.mxu0 0
    %427 = vmatpush1.bf16.msra.mxu0 0
    %428 = vmatprep.subr.bf16.mxu0 0
    %429 = vmatpush1.bf16.msra.mxu0 0
    %430 = vmatprep.subr.bf16.mxu0 0
    %431 = vmatpush1.bf16.msra.mxu0 0
    %432 = vmatprep.mubr.bf16.mxu0 0
    %433 = vmatmul.mubr.bf16.gmra.mrb[0].mxu0 %v398
    %v434 = vpop.f32.mrb[0].mxu0
    %v435 = vadd.f32 %v370, %v434
    %v436 = vpop.f32.mrb[0].mxu0
    %v437 = vpop.f32.mrb[0].mxu0
    %v438 = vpop.f32.mrb[0].mxu0
    %439 = vdwg.mxu0
    %vm440 = vcmp.gt.f32.partialorder %v435, 0.0
    %v441 = vmul.f32 %v435, 0.01
    %v442 = vsel %vm440, %v435, %v441
    %v443 = vpack.c.bf16 %v442, %v442
    %v444 = vld [vmem:[%s9] sm:$0xf]
    %v445 = vld [vmem:[%s9 + $0x4] sm:$0xf]
    %v446 = vld [vmem:[%s9 + $0x8] sm:$0xf]
    %v447 = vld [vmem:[%s9 + $0xc] sm:$0xf]
    %v448 = vld [vmem:[%s9 + $0x10] sm:$0xf]
    %v449 = vld [vmem:[%s9 + $0x14] sm:$0xf]
    %v450 = vld [vmem:[%s9 + $0x18] sm:$0xf]
    %v451 = vld [vmem:[%s9 + $0x1c] sm:$0xf]
    %v452 = vld [vmem:[#allocation2] sm:$0x1]
    %v454 = vlaneseq
    %v455 = vshrl.u32 %v454, 7
    %v456 = vsub.s32 0, %v455
    %v457 = vrot.slane %v452, %v456
    %v467 = vunpack.c.l.b16 %v444
    %v468 = vunpack.c.l.b16 %v445
    %v469 = vunpack.c.l.b16 %v446
    %v470 = vunpack.c.l.b16 %v447
    %v471 = vunpack.c.l.b16 %v448
    %v472 = vunpack.c.l.b16 %v449
    %v473 = vunpack.c.l.b16 %v450
    %v474 = vunpack.c.l.b16 %v451
    %v475 = vpack.c.b16 %v468, %v467
    %v476 = vpack.c.b16 %v470, %v469
    %v477 = vpack.c.b16 %v472, %v471
    %v478 = vpack.c.b16 %v474, %v473
    %v484 = vsel %vm396, %v443, 0
    %486 = vmatprep.subr.bf16.mxu0 0
    %487 = vmatpush1.bf16.msra.mxu0 %v475
    %488 = vmatprep.subr.bf16.mxu0 0
    %489 = vmatpush1.bf16.msra.mxu0 %v476
    %490 = vmatprep.subr.bf16.mxu0 0
    %491 = vmatpush1.bf16.msra.mxu0 %v477
    %492 = vmatprep.subr.bf16.mxu0 0
    %493 = vmatpush1.bf16.msra.mxu0 %v478
    %494 = vmatprep.subr.bf16.mxu0 0
    %495 = vmatpush1.bf16.msra.mxu0 0
    %496 = vmatprep.subr.bf16.mxu0 0
    %497 = vmatpush1.bf16.msra.mxu0 0
    %498 = vmatprep.subr.bf16.mxu0 0
    %499 = vmatpush1.bf16.msra.mxu0 0
    %500 = vmatprep.subr.bf16.mxu0 0
    %501 = vmatpush1.bf16.msra.mxu0 0
    %502 = vmatprep.subr.bf16.mxu0 0
    %503 = vmatpush1.bf16.msra.mxu0 0
    %504 = vmatprep.subr.bf16.mxu0 0
    %505 = vmatpush1.bf16.msra.mxu0 0
    %506 = vmatprep.subr.bf16.mxu0 0
    %507 = vmatpush1.bf16.msra.mxu0 0
    %508 = vmatprep.subr.bf16.mxu0 0
    %509 = vmatpush1.bf16.msra.mxu0 0
    %510 = vmatprep.subr.bf16.mxu0 0
    %511 = vmatpush1.bf16.msra.mxu0 0
    %512 = vmatprep.subr.bf16.mxu0 0
    %513 = vmatpush1.bf16.msra.mxu0 0
    %514 = vmatprep.subr.bf16.mxu0 0
    %515 = vmatpush1.bf16.msra.mxu0 0
    %516 = vmatprep.subr.bf16.mxu0 0
    %517 = vmatpush1.bf16.msra.mxu0 0
    %518 = vmatprep.mubr.bf16.mxu0 0
    %519 = vmatmul.mubr.bf16.gmra.mrb[0].mxu0 %v484
    %v520 = vpop.f32.mrb[0].mxu0
    %v521 = vadd.f32 %v457, %v520
    %v522 = vpop.f32.mrb[0].mxu0
    %v523 = vpop.f32.mrb[0].mxu0
    %v524 = vpop.f32.mrb[0].mxu0
    %525 = vdwg.mxu0
    %v526 = vld [vmem:[%s2] sm:$0xff]
    %vm527 = vcmp.gt.f32.partialorder %v526, 0.0
    %v528 = vsel %vm527, %v521, -inf
    %529 = vmax.xlane.f32.xlu0 %v528
    %v530 = vpop.xlane.xlu0 %529
    %v531 = vsub.f32 %v521, %v530
    %v532 = vmul.f32 %v531, 1.442695
    %v533 = vpow.pop %v532
    %v534 = vsel %vm527, %v533, 0.0
    %v535 = vmul.f32 %v526, %v534
    %536 = vadd.xlane.f32.xlu0 %v535
    %v537 = vpop.xlane.xlu0 %536
    %v538 = vrcp.pop %v537
    %v539 = vmul.f32 %v535, %v538
    %540 = vst [vmem:[#allocation11] sm:$0xff] %v539
    %v541 = vlog2.pop %v526
    %v542 = vmul.f32 %v541, 0.6931472
    %v543 = vadd.f32 %v542, %v521
    %v544 = vsub.f32 %v543, %v530
    %v545 = vlog2.pop %v537
    %v546 = vmul.f32 %v545, 0.6931472
    %v547 = vsub.f32 %v544, %v546
    %v548 = vsel %vm527, %v547, -inf
    %549 = vst [vmem:[%s18] sm:$0xff] %v548
    %v550 = vld [vmem:[%s11] sm:$0xf]
    %v551 = vld [vmem:[%s11 + $0x4] sm:$0xf]
    %v552 = vld [vmem:[%s11 + $0x8] sm:$0xf]
    %v553 = vld [vmem:[%s11 + $0xc] sm:$0xf]
    %v554 = vld [vmem:[%s11 + $0x10] sm:$0xf]
    %v555 = vld [vmem:[%s11 + $0x14] sm:$0xf]
    %v556 = vld [vmem:[%s11 + $0x18] sm:$0xf]
    %v557 = vld [vmem:[%s11 + $0x1c] sm:$0xf]
    %v558 = vld [vmem:[#allocation5] sm:$0x1]
    %v560 = vlaneseq
    %v561 = vshrl.u32 %v560, 7
    %v562 = vsub.s32 0, %v561
    %v563 = vrot.slane %v558, %v562
    %v573 = vunpack.c.l.b16 %v550
    %v574 = vunpack.c.l.b16 %v551
    %v575 = vunpack.c.l.b16 %v552
    %v576 = vunpack.c.l.b16 %v553
    %v577 = vunpack.c.l.b16 %v554
    %v578 = vunpack.c.l.b16 %v555
    %v579 = vunpack.c.l.b16 %v556
    %v580 = vunpack.c.l.b16 %v557
    %v581 = vpack.c.b16 %v574, %v573
    %v582 = vpack.c.b16 %v576, %v575
    %v583 = vpack.c.b16 %v578, %v577
    %v584 = vpack.c.b16 %v580, %v579
    %589 = vmatprep.subr.bf16.mxu0 0
    %590 = vmatpush1.bf16.msra.mxu0 %v581
    %591 = vmatprep.subr.bf16.mxu0 0
    %592 = vmatpush1.bf16.msra.mxu0 %v582
    %593 = vmatprep.subr.bf16.mxu0 0
    %594 = vmatpush1.bf16.msra.mxu0 %v583
    %595 = vmatprep.subr.bf16.mxu0 0
    %596 = vmatpush1.bf16.msra.mxu0 %v584
    %597 = vmatprep.subr.bf16.mxu0 0
    %598 = vmatpush1.bf16.msra.mxu0 0
    %599 = vmatprep.subr.bf16.mxu0 0
    %600 = vmatpush1.bf16.msra.mxu0 0
    %601 = vmatprep.subr.bf16.mxu0 0
    %602 = vmatpush1.bf16.msra.mxu0 0
    %603 = vmatprep.subr.bf16.mxu0 0
    %604 = vmatpush1.bf16.msra.mxu0 0
    %605 = vmatprep.subr.bf16.mxu0 0
    %606 = vmatpush1.bf16.msra.mxu0 0
    %607 = vmatprep.subr.bf16.mxu0 0
    %608 = vmatpush1.bf16.msra.mxu0 0
    %609 = vmatprep.subr.bf16.mxu0 0
    %610 = vmatpush1.bf16.msra.mxu0 0
    %611 = vmatprep.subr.bf16.mxu0 0
    %612 = vmatpush1.bf16.msra.mxu0 0
    %613 = vmatprep.subr.bf16.mxu0 0
    %614 = vmatpush1.bf16.msra.mxu0 0
    %615 = vmatprep.subr.bf16.mxu0 0
    %616 = vmatpush1.bf16.msra.mxu0 0
    %617 = vmatprep.subr.bf16.mxu0 0
    %618 = vmatpush1.bf16.msra.mxu0 0
    %619 = vmatprep.subr.bf16.mxu0 0
    %620 = vmatpush1.bf16.msra.mxu0 0
    %621 = vmatprep.mubr.bf16.mxu0 0
    %622 = vmatmul.mubr.bf16.gmra.mrb[0].mxu0 %v484
    %v623 = vpop.f32.mrb[0].mxu0
    %v624 = vadd.f32 %v563, %v623
    %v625 = vpop.f32.mrb[0].mxu0
    %v626 = vpop.f32.mrb[0].mxu0
    %v627 = vpop.f32.mrb[0].mxu0
    %628 = vdwg.mxu0
    %vm629 = vcmp.gt.f32.partialorder %v624, 0.0
    %v630 = vmul.f32 %v624, 0.01
    %v631 = vsel %vm629, %v624, %v630
    %v632 = vpack.c.bf16 %v631, %v631
    %v633 = vld [vmem:[%s13] sm:$0xf]
    %v634 = vld [vmem:[%s13 + $0x4] sm:$0xf]
    %v635 = vld [vmem:[%s13 + $0x8] sm:$0xf]
    %v636 = vld [vmem:[%s13 + $0xc] sm:$0xf]
    %v637 = vld [vmem:[%s13 + $0x10] sm:$0xf]
    %v638 = vld [vmem:[%s13 + $0x14] sm:$0xf]
    %v639 = vld [vmem:[%s13 + $0x18] sm:$0xf]
    %v640 = vld [vmem:[%s13 + $0x1c] sm:$0xf]
    %v641 = vld [vmem:[#allocation7] sm:$0x1]
    %v643 = vlaneseq
    %v644 = vshrl.u32 %v643, 7
    %v645 = vsub.s32 0, %v644
    %v646 = vrot.slane %v641, %v645
    %v656 = vunpack.c.l.b16 %v633
    %v657 = vunpack.c.l.b16 %v634
    %v658 = vunpack.c.l.b16 %v635
    %v659 = vunpack.c.l.b16 %v636
    %v660 = vunpack.c.l.b16 %v637
    %v661 = vunpack.c.l.b16 %v638
    %v662 = vunpack.c.l.b16 %v639
    %v663 = vunpack.c.l.b16 %v640
    %v664 = vpack.c.b16 %v657, %v656
    %v665 = vpack.c.b16 %v659, %v658
    %v666 = vpack.c.b16 %v661, %v660
    %v667 = vpack.c.b16 %v663, %v662
    %v673 = vsel %vm396, %v632, 0
    %675 = vmatprep.subr.bf16.mxu0 0
    %676 = vmatpush1.bf16.msra.mxu0 %v664
    %677 = vmatprep.subr.bf16.mxu0 0
    %678 = vmatpush1.bf16.msra.mxu0 %v665
    %679 = vmatprep.subr.bf16.mxu0 0
    %680 = vmatpush1.bf16.msra.mxu0 %v666
    %681 = vmatprep.subr.bf16.mxu0 0
    %682 = vmatpush1.bf16.msra.mxu0 %v667
    %683 = vmatprep.subr.bf16.mxu0 0
    %684 = vmatpush1.bf16.msra.mxu0 0
    %685 = vmatprep.subr.bf16.mxu0 0
    %686 = vmatpush1.bf16.msra.mxu0 0
    %687 = vmatprep.subr.bf16.mxu0 0
    %688 = vmatpush1.bf16.msra.mxu0 0
    %689 = vmatprep.subr.bf16.mxu0 0
    %690 = vmatpush1.bf16.msra.mxu0 0
    %691 = vmatprep.subr.bf16.mxu0 0
    %692 = vmatpush1.bf16.msra.mxu0 0
    %693 = vmatprep.subr.bf16.mxu0 0
    %694 = vmatpush1.bf16.msra.mxu0 0
    %695 = vmatprep.subr.bf16.mxu0 0
    %696 = vmatpush1.bf16.msra.mxu0 0
    %697 = vmatprep.subr.bf16.mxu0 0
    %698 = vmatpush1.bf16.msra.mxu0 0
    %699 = vmatprep.subr.bf16.mxu0 0
    %700 = vmatpush1.bf16.msra.mxu0 0
    %701 = vmatprep.subr.bf16.mxu0 0
    %702 = vmatpush1.bf16.msra.mxu0 0
    %703 = vmatprep.subr.bf16.mxu0 0
    %704 = vmatpush1.bf16.msra.mxu0 0
    %705 = vmatprep.subr.bf16.mxu0 0
    %706 = vmatpush1.bf16.msra.mxu0 0
    %707 = vmatprep.mubr.bf16.mxu0 0
    %708 = vmatmul.mubr.bf16.gmra.mrb[0].mxu0 %v673
    %v709 = vpop.f32.mrb[0].mxu0
    %v710 = vadd.f32 %v646, %v709
    %v711 = vpop.f32.mrb[0].mxu0
    %v712 = vpop.f32.mrb[0].mxu0
    %v713 = vpop.f32.mrb[0].mxu0
    %714 = vdwg.mxu0
    %vm715 = vcmp.gt.f32.partialorder %v710, 0.0
    %v716 = vmul.f32 %v710, 0.01
    %v717 = vsel %vm715, %v710, %v716
    %v718 = vpack.c.bf16 %v717, %v717
    %v719 = vld [vmem:[#allocation8] sm:$0xf]
    %v720 = vld [vmem:[#allocation8 + $0x4] sm:$0xf]
    %v721 = vld [vmem:[#allocation8 + $0x8] sm:$0xf]
    %v722 = vld [vmem:[#allocation8 + $0xc] sm:$0xf]
    %v723 = vld [vmem:[#allocation8 + $0x10] sm:$0xf]
    %v724 = vld [vmem:[#allocation8 + $0x14] sm:$0xf]
    %v725 = vld [vmem:[#allocation8 + $0x18] sm:$0xf]
    %v726 = vld [vmem:[#allocation8 + $0x1c] sm:$0xf]
    %v727 = vld [vmem:[#allocation10] sm:$0x1]
    %v729 = vlaneseq
    %v730 = vshrl.u32 %v729, 7
    %v731 = vsub.s32 0, %v730
    %v732 = vrot.slane %v727, %v731
    %v742 = vunpack.c.l.b16 %v719
    %v743 = vunpack.c.l.b16 %v720
    %v744 = vunpack.c.l.b16 %v721
    %v745 = vunpack.c.l.b16 %v722
    %v746 = vunpack.c.l.b16 %v723
    %v747 = vunpack.c.l.b16 %v724
    %v748 = vunpack.c.l.b16 %v725
    %v749 = vunpack.c.l.b16 %v726
    %v750 = vpack.c.b16 %v743, %v742
    %v751 = vpack.c.b16 %v745, %v744
    %v752 = vpack.c.b16 %v747, %v746
    %v753 = vpack.c.b16 %v749, %v748
    %v759 = vsel %vm396, %v718, 0
    %761 = vmatprep.subr.bf16.mxu0 0
    %762 = vmatpush1.bf16.msra.mxu0 %v750
    %763 = vmatprep.subr.bf16.mxu0 0
    %764 = vmatpush1.bf16.msra.mxu0 %v751
    %765 = vmatprep.subr.bf16.mxu0 0
    %766 = vmatpush1.bf16.msra.mxu0 %v752
    %767 = vmatprep.subr.bf16.mxu0 0
    %768 = vmatpush1.bf16.msra.mxu0 %v753
    %769 = vmatprep.subr.bf16.mxu0 0
    %770 = vmatpush1.bf16.msra.mxu0 0
    %771 = vmatprep.subr.bf16.mxu0 0
    %772 = vmatpush1.bf16.msra.mxu0 0
    %773 = vmatprep.subr.bf16.mxu0 0
    %774 = vmatpush1.bf16.msra.mxu0 0
    %775 = vmatprep.subr.bf16.mxu0 0
    %776 = vmatpush1.bf16.msra.mxu0 0
    %777 = vmatprep.subr.bf16.mxu0 0
    %778 = vmatpush1.bf16.msra.mxu0 0
    %779 = vmatprep.subr.bf16.mxu0 0
    %780 = vmatpush1.bf16.msra.mxu0 0
    %781 = vmatprep.subr.bf16.mxu0 0
    %782 = vmatpush1.bf16.msra.mxu0 0
    %783 = vmatprep.subr.bf16.mxu0 0
    %784 = vmatpush1.bf16.msra.mxu0 0
    %785 = vmatprep.subr.bf16.mxu0 0
    %786 = vmatpush1.bf16.msra.mxu0 0
    %787 = vmatprep.subr.bf16.mxu0 0
    %788 = vmatpush1.bf16.msra.mxu0 0
    %789 = vmatprep.subr.bf16.mxu0 0
    %790 = vmatpush1.bf16.msra.mxu0 0
    %791 = vmatprep.subr.bf16.mxu0 0
    %792 = vmatpush1.bf16.msra.mxu0 0
    %793 = vmatprep.mubr.bf16.mxu0 0
    %794 = vmatmul.mubr.bf16.gmra.mrb[0].mxu0 %v759
    %v795 = vpop.f32.mrb[0].mxu0
    %v796 = vadd.f32 %v732, %v795
    %v797 = vpop.f32.mrb[0].mxu0
    %v798 = vpop.f32.mrb[0].mxu0
    %v799 = vpop.f32.mrb[0].mxu0
    %800 = vdwg.mxu0
    %vm801 = vcmp.lt.s32.totalorder %v123, 4
    %v802 = vsel %vm801, %v796, -inf
    %803 = vmax.xlane.f32.xlu0 %v802
    %v804 = vpop.xlane.xlu0 %803
    %v805 = vsub.f32 %v796, %v804
    %v806 = vmul.f32 %v805, 1.442695
    %v807 = vpow.pop %v806
    %v808 = vsel %vm801, %v807, 0.0
    %809 = vadd.xlane.f32.xlu0 %v808
    %v810 = vpop.xlane.xlu0 %809
    %v811 = vrcp.pop %v810
    %v812 = vmul.f32 %v808, %v811
    %813 = vst [vmem:[%s19] sm:$0xff] %v812
    %v814 = vld [vmem:[%s3] sm:$0xff]
    %vm815 = vcmp.gt.f32.partialorder %v814, 0.0
    %v816 = vsel %vm815, %v796, -inf
    %817 = vmax.xlane.f32.xlu0 %v816
    %v818 = vpop.xlane.xlu0 %817
    %v819 = vsub.f32 %v796, %v818
    %v820 = vmul.f32 %v819, 1.442695
    %v821 = vpow.pop %v820
    %v822 = vsel %vm815, %v821, 0.0
    %v823 = vmul.f32 %v814, %v822
    %824 = vadd.xlane.f32.xlu0 %v823
    %v825 = vpop.xlane.xlu0 %824
    %v826 = vlog2.pop %v814
    %v827 = vmul.f32 %v826, 0.6931472
    %v828 = vadd.f32 %v827, %v796
    %v829 = vsub.f32 %v828, %v818
    %v830 = vlog2.pop %v825
    %v831 = vmul.f32 %v830, 0.6931472
    %v832 = vsub.f32 %v829, %v831
    %v833 = vsel %vm815, %v832, -inf
    %834 = vst [vmem:[%s20] sm:$0xff] %v833
    // Predicated region
    $region90: #{betsize_actor_forward.1} parent=1 // pred_check
      _
    $region91: #{betsize_actor_forward.1} parent=1 // pred_check_branch
      %836 = sbr.rel (0) target = $region93
    $region92: #{betsize_actor_forward.1} parent=1 // pred_region
      %s838 = ssub.s32 128, 128
      %839 = vsyncadd [#allocation4], %s838
      %s841 = sshll.u32 [#allocation11], 4
      %s842 = int_to_ptr.vmem [resolvable:$true] %s841
      %844 = dma.vmem_to_hbm [thread:$0]  %s842, 128, %s17, [#allocation4]
    $region93: #{betsize_actor_forward.1} parent=1 // pred_fallthru
      _
    // Predicated region
    $region94: #{betsize_actor_forward.1} parent=1 // pred_check
      _
    $region95: #{betsize_actor_forward.1} parent=1 // pred_check_branch
      %846 = sbr.rel (0) target = $region97
    $region96: #{betsize_actor_forward.1} parent=1 // pred_region
      _
    $region97: #{betsize_actor_forward.1} parent=1 // pred_fallthru
      _
    // Predicated region
    $region98: #{betsize_actor_forward.1} parent=1 // pred_check
      _
    $region99: #{betsize_actor_forward.1} parent=1 // pred_check_branch
      %848 = sbr.rel (0) target = $region101
    $region100: #{betsize_actor_forward.1} parent=1 // pred_region
      _
    $region101: #{betsize_actor_forward.1} parent=1 // pred_fallthru
      _
    // Predicated region
    $region102: #{betsize_actor_forward.1} parent=1 // pred_check
      _
    $region103: #{betsize_actor_forward.1} parent=1 // pred_check_branch
      %850 = sbr.rel (0) target = $region105
    $region104: #{betsize_actor_forward.1} parent=1 // pred_region
      _
    $region105: #{betsize_actor_forward.1} parent=1 // pred_fallthru
      _
    // Predicated region
    $region106: #{betsize_actor_forward.1} parent=1 // pred_check
      _
    $region107: #{betsize_actor_forward.1} parent=1 // pred_check_branch
      %852 = sbr.rel (0) target = $region109
    $region108: #{betsize_actor_forward.1} parent=1 // pred_region
      %853 = dma.done [#allocation4], 128
    $region109: #{betsize_actor_forward.1} parent=1 // pred_fallthru
      _
    // Predicated region
    $region110: #{betsize_actor_forward.1} parent=1 // pred_check
      _
    $region111: #{betsize_actor_forward.1} parent=1 // pred_check_branch
      %855 = sbr.rel (0) target = $region113
    $region112: #{betsize_actor_forward.1} parent=1 // pred_region
      _
    $region113: #{betsize_actor_forward.1} parent=1 // pred_fallthru
      _
    // Predicated region
    $region114: #{betsize_actor_forward.1} parent=1 // pred_check
      _
    $region115: #{betsize_actor_forward.1} parent=1 // pred_check_branch
      %857 = sbr.rel (0) target = $region117
    $region116: #{betsize_actor_forward.1} parent=1 // pred_region
      _
    $region117: #{betsize_actor_forward.1} parent=1 // pred_fallthru
      _
    // Predicated region
    $region118: #{betsize_actor_forward.1} parent=1 // pred_check
      _
    $region119: #{betsize_actor_forward.1} parent=1 // pred_check_branch
      %859 = sbr.rel (0) target = $region121
    $region120: #{betsize_actor_forward.1} parent=1 // pred_region
      _
    $region121: #{betsize_actor_forward.1} parent=1 // pred_fallthru
      _
    %860 = vsyncpa [#allocation3], 1
    %861 = vsyncpa [#allocation6], 1
    %862 = vsyncpa [#allocation9], 1
    %863 = vsyncpa [#allocation4], 1

</llo_original>
